<compile_context>
chip_gen: v6e
topology: v6e:2x2x1
jax: 0.10.0
libtpu: 0.0.40
codegen_flags: <defaults>
</compile_context>

<pallas_src>
import functools
import math

import jax
import jax.numpy as jnp
from jax.experimental import pallas as pl
from jax.experimental.pallas import tpu as pltpu


def net_kernel(x_ref, w1_ref, b1_ref, w2_ref, b2_ref, w3_ref, b3_ref, out_ref):
    # x_ref: (d_in, TILE_N) -- batch on the lane axis.
    x = x_ref[...]
    h = jnp.tanh(jnp.dot(w1_ref[...], x,
                         preferred_element_type=jnp.float32) + b1_ref[...])   # (32, TN)
    h = jnp.tanh(jnp.dot(w2_ref[...], h,
                         preferred_element_type=jnp.float32) + b2_ref[...])   # (32, TN)
    # Final layer has a single output unit: VPU multiply + sublane reduce (no MXU drain).
    out_ref[...] = (jnp.sum(w3_ref[...] * h, axis=0, keepdims=True)
                    + b3_ref[0, 0])                                            # (1, TN)


@functools.partial(jax.jit, static_argnames=("max_tile_n",))
def net_forward(x, params, *, max_tile_n=1024):
    """x: (N, input_dim) f32.  Returns (N, 1) f32."""
    w1, b1, w2, b2, w3c, b3 = params            # (32,2) (32,1) (32,32) (32,1) (32,1) (1,1)
    n, d_in = x.shape
    h1 = w1.shape[0]
    h2 = w2.shape[0]

    # Lane-aligned tile; shrink for small batches so we never over-pad.
    n_lanes = 128 * pl.cdiv(n, 128)
    tile_n = min(max_tile_n, n_lanes)
    n_pad = tile_n * pl.cdiv(n, tile_n)

    xt = jnp.pad(x.astype(jnp.float32).T, ((0, 0), (0, n_pad - n)))   # (d_in, n_pad)

    flops = int(n_pad) * (2 * d_in * h1 + 2 * h1 * h2 + 2 * h2)
    transcendentals = int(n_pad) * (h1 + h2)
    bytes_accessed = 4 * (int(n_pad) * (d_in + 1)
                          + int(w1.size) + int(b1.size) + int(w2.size)
                          + int(b2.size) + int(w3c.size) + int(b3.size))

    out_t = pl.pallas_call(
        net_kernel,
        out_shape=jax.ShapeDtypeStruct((1, n_pad), jnp.float32),
        grid=(n_pad // tile_n,),
        in_specs=[
            pl.BlockSpec((d_in, tile_n), lambda i: (0, i)),     # x tile (lane-dense)
            pl.BlockSpec((h1, d_in), lambda i: (0, 0)),         # W1 (VMEM-resident)
            pl.BlockSpec((h1, 1), lambda i: (0, 0)),            # b1 column
            pl.BlockSpec((h2, h1), lambda i: (0, 0)),           # W2
            pl.BlockSpec((h2, 1), lambda i: (0, 0)),            # b2 column
            pl.BlockSpec((h2, 1), lambda i: (0, 0)),            # W3^T column
            pl.BlockSpec(memory_space=pltpu.MemorySpace.SMEM),  # b3 scalar
        ],
        out_specs=pl.BlockSpec((1, tile_n), lambda i: (0, i)),
        compiler_params=pltpu.CompilerParams(
            dimension_semantics=("parallel",)),
        cost_estimate=pl.CostEstimate(flops=flops,
                                      transcendentals=transcendentals,
                                      bytes_accessed=bytes_accessed),
    )(xt, w1, b1, w2, b2, w3c, b3)

    return out_t[:, :n].T                                        # (N, 1)


def init_params(key, input_dim=2, layer_wid=(32, 32, 1)):
    """Deterministic PyTorch-Linear-style uniform init.

    Weights are kept in torch's native (out, in) layout so the kernel computes
    y^T = W @ x^T + b_col; the final (1, H) weight is stored as an (H, 1) column.
    """
    dims = (input_dim,) + tuple(layer_wid)          # (2, 32, 32, 1)
    keys = jax.random.split(key, 6)

    def lin(kw, kb, fan_in, fan_out):
        bound = 1.0 / math.sqrt(fan_in)
        w = jax.random.uniform(kw, (fan_out, fan_in), jnp.float32, -bound, bound)
        b = jax.random.uniform(kb, (fan_out, 1), jnp.float32, -bound, bound)
        return w, b

    w1, b1 = lin(keys[0], keys[1], dims[0], dims[1])
    w2, b2 = lin(keys[2], keys[3], dims[1], dims[2])
    w3, b3 = lin(keys[4], keys[5], dims[2], dims[3])   # w3: (1, 32), b3: (1, 1)
    return w1, b1, w2, b2, w3.T, b3                    # store W3 as a (32, 1) column


def reference_forward(x, params):
    """Pure-JAX reference (row layout, torch semantics) for a correctness check."""
    w1, b1, w2, b2, w3c, b3 = params
    h = jnp.tanh(x @ w1.T + b1.T)
    h = jnp.tanh(h @ w2.T + b2.T)
    return h @ w3c + b3


if __name__ == "__main__":
    key = jax.random.PRNGKey(0)
    k_x, k_p = jax.random.split(key)

    N, INPUT_DIM = 8, 2                              # small test batch, input_dim = 2
    x = jax.random.uniform(k_x, (N, INPUT_DIM), jnp.float32, -2.0, 2.0)
    params = init_params(k_p, input_dim=INPUT_DIM, layer_wid=(32, 32, 1))

    out = jax.block_until_ready(net_forward(x, params))
    ref = reference_forward(x, params)

    assert out.shape == (N, 1), out.shape
    assert jnp.allclose(out, ref, atol=1e-4, rtol=1e-4), (out, ref)

    print("KERNEL_OK")
</pallas_src>

<mosaic_0001>
module attributes {stable_mosaic.version = 11 : i64} {
  func.func @net_kernel(%arg0: i32, %arg1: memref<2x128xf32, #tpu.memory_space<vmem>>, %arg2: memref<32x2xf32, #tpu.memory_space<vmem>>, %arg3: memref<32x1xf32, #tpu.memory_space<vmem>>, %arg4: memref<32x32xf32, #tpu.memory_space<vmem>>, %arg5: memref<32x1xf32, #tpu.memory_space<vmem>>, %arg6: memref<32x1xf32, #tpu.memory_space<vmem>>, %arg7: memref<1x1xf32, #tpu.memory_space<smem>>, %arg8: memref<1x128xf32, #tpu.memory_space<vmem>>) attributes {dimension_semantics = [#tpu.dimension_semantics<parallel>], iteration_bounds = array<i64: 1>, scalar_prefetch = 0 : i64, scratch_operands = 0 : i64, tpu.core_type = #tpu.core_type<tc>, window_params = [{transform_indices = @transform_0, window_bounds = array<i64: 2, 128>}, {pipeline_mode = #tpu.pipeline_mode<synchronous>, transform_indices = @transform_1, window_bounds = array<i64: 32, 2>}, {pipeline_mode = #tpu.pipeline_mode<synchronous>, transform_indices = @transform_2, window_bounds = array<i64: 32, 1>}, {pipeline_mode = #tpu.pipeline_mode<synchronous>, transform_indices = @transform_3, window_bounds = array<i64: 32, 32>}, {pipeline_mode = #tpu.pipeline_mode<synchronous>, transform_indices = @transform_4, window_bounds = array<i64: 32, 1>}, {pipeline_mode = #tpu.pipeline_mode<synchronous>, transform_indices = @transform_5, window_bounds = array<i64: 32, 1>}, {transform_indices = @transform_6, window_bounds = array<i64: 1, 1>}, {transform_indices = @transform_7, window_bounds = array<i64: 1, 128>}]} {
    %c0 = arith.constant 0 : index
    %c0_0 = arith.constant 0 : index
    %0 = vector.load %arg1[%c0, %c0_0] : memref<2x128xf32, #tpu.memory_space<vmem>>, vector<2x128xf32>
    %c0_1 = arith.constant 0 : index
    %c0_2 = arith.constant 0 : index
    %1 = vector.load %arg2[%c0_1, %c0_2] : memref<32x2xf32, #tpu.memory_space<vmem>>, vector<32x2xf32>
    %cst = arith.constant dense<0.000000e+00> : vector<32x128xf32>
    %2 = tpu.matmul %1, %0, %cst {dimension_numbers = #tpu.dot_dimension_numbers<[1], [0], [0], [1], [0, 0, 1, 1], [], []>} : vector<32x2xf32>, vector<2x128xf32>, vector<32x128xf32> -> vector<32x128xf32>
    %c0_3 = arith.constant 0 : index
    %c0_4 = arith.constant 0 : index
    %3 = vector.load %arg3[%c0_3, %c0_4] : memref<32x1xf32, #tpu.memory_space<vmem>>, vector<32x1xf32>
    %4 = vector.broadcast %3 : vector<32x1xf32> to vector<32x128xf32>
    %5 = arith.addf %2, %4 : vector<32x128xf32>
    %6 = math.tanh %5 : vector<32x128xf32>
    %c0_5 = arith.constant 0 : index
    %c0_6 = arith.constant 0 : index
    %7 = vector.load %arg4[%c0_5, %c0_6] : memref<32x32xf32, #tpu.memory_space<vmem>>, vector<32x32xf32>
    %cst_7 = arith.constant dense<0.000000e+00> : vector<32x128xf32>
    %8 = tpu.matmul %7, %6, %cst_7 {dimension_numbers = #tpu.dot_dimension_numbers<[1], [0], [0], [1], [0, 0, 1, 1], [], []>} : vector<32x32xf32>, vector<32x128xf32>, vector<32x128xf32> -> vector<32x128xf32>
    %c0_8 = arith.constant 0 : index
    %c0_9 = arith.constant 0 : index
    %9 = vector.load %arg5[%c0_8, %c0_9] : memref<32x1xf32, #tpu.memory_space<vmem>>, vector<32x1xf32>
    %10 = vector.broadcast %9 : vector<32x1xf32> to vector<32x128xf32>
    %11 = arith.addf %8, %10 : vector<32x128xf32>
    %12 = math.tanh %11 : vector<32x128xf32>
    %c0_10 = arith.constant 0 : index
    %c0_11 = arith.constant 0 : index
    %13 = vector.load %arg6[%c0_10, %c0_11] : memref<32x1xf32, #tpu.memory_space<vmem>>, vector<32x1xf32>
    %14 = vector.broadcast %13 : vector<32x1xf32> to vector<32x128xf32>
    %15 = arith.mulf %14, %12 : vector<32x128xf32>
    %cst_12 = arith.constant dense<0.000000e+00> : vector<128xf32>
    %16 = vector.multi_reduction <add>, %15, %cst_12 [0] : vector<32x128xf32> to vector<128xf32>
    %17 = vector.shape_cast %16 : vector<128xf32> to vector<1x128xf32>
    %c0_13 = arith.constant 0 : index
    %c0_14 = arith.constant 0 : index
    %18 = memref.load %arg7[%c0_13, %c0_14] : memref<1x1xf32, #tpu.memory_space<smem>>
    %19 = vector.broadcast %18 : f32 to vector<1x128xf32>
    %20 = arith.addf %17, %19 : vector<1x128xf32>
    %c0_15 = arith.constant 0 : index
    %c0_16 = arith.constant 0 : index
    %21 = vector.load %arg8[%c0_15, %c0_16] : memref<1x128xf32, #tpu.memory_space<vmem>>, vector<1x128xf32>
    tpu.vector_store %arg8[%c0_15, %c0_16], %20 {strides = array<i32>} : memref<1x128xf32, #tpu.memory_space<vmem>>, vector<1x128xf32>,
    return
  }
  func.func @transform_0(%arg0: i32) -> (i32, i32) {
    %c0_i32 = arith.constant 0 : i32
    %c0_i32_0 = arith.constant 0 : i32
    return %c0_i32, %arg0 : i32, i32
  }
  func.func @transform_1(%arg0: i32) -> (i32, i32) {
    %c0_i32 = arith.constant 0 : i32
    %c0_i32_0 = arith.constant 0 : i32
    %c0_i32_1 = arith.constant 0 : i32
    return %c0_i32, %c0_i32_0 : i32, i32
  }
  func.func @transform_2(%arg0: i32) -> (i32, i32) {
    %c0_i32 = arith.constant 0 : i32
    %c0_i32_0 = arith.constant 0 : i32
    %c0_i32_1 = arith.constant 0 : i32
    return %c0_i32, %c0_i32_0 : i32, i32
  }
  func.func @transform_3(%arg0: i32) -> (i32, i32) {
    %c0_i32 = arith.constant 0 : i32
    %c0_i32_0 = arith.constant 0 : i32
    %c0_i32_1 = arith.constant 0 : i32
    return %c0_i32, %c0_i32_0 : i32, i32
  }
  func.func @transform_4(%arg0: i32) -> (i32, i32) {
    %c0_i32 = arith.constant 0 : i32
    %c0_i32_0 = arith.constant 0 : i32
    %c0_i32_1 = arith.constant 0 : i32
    return %c0_i32, %c0_i32_0 : i32, i32
  }
  func.func @transform_5(%arg0: i32) -> (i32, i32) {
    %c0_i32 = arith.constant 0 : i32
    %c0_i32_0 = arith.constant 0 : i32
    %c0_i32_1 = arith.constant 0 : i32
    return %c0_i32, %c0_i32_0 : i32, i32
  }
  func.func @transform_6(%arg0: i32) -> (i32, i32) {
    %c0_i32 = arith.constant 0 : i32
    %c0_i32_0 = arith.constant 0 : i32
    %c0_i32_1 = arith.constant 0 : i32
    return %c0_i32, %c0_i32_0 : i32, i32
  }
  func.func @transform_7(%arg0: i32) -> (i32, i32) {
    %c0_i32 = arith.constant 0 : i32
    %c0_i32_0 = arith.constant 0 : i32
    return %c0_i32, %arg0 : i32, i32
  }
}

</mosaic_0001>

<llo_original>
// kernel: net_forward.1
$region0: #{net_forward.1}
  #allocation0 [shape = 'u32[]', space=smem, size = 0x4, offset = 0x4, fixed_abs, tag = 'smem constant byte address 0x4 - core index']
  #allocation1 [shape = 'u32[144,128]{1,0:T(1,128)}', space=vmem, size = 0x12000, scoped, tag = 'internal scratch']
  #allocation2 [shape = 'f32[1,1]{1,0:T(1,128)S(6)}', space=smem, size = 0x200, scoped, tag = 'scoped memory for net_forward.1']
  %s0 = inlined_call_operand.vmem [shape: f32[2,128], index: 0, kind: input, shape index: {}]
  %s1 = inlined_call_operand.vmem [shape: f32[32,2], index: 1, kind: input, shape index: {}]
  %s2 = inlined_call_operand.vmem [shape: f32[32,1], index: 2, kind: input, shape index: {}]
  %s3 = inlined_call_operand.vmem [shape: f32[32,32], index: 3, kind: input, shape index: {}]
  %s4 = inlined_call_operand.vmem [shape: f32[32,1], index: 4, kind: input, shape index: {}]
  %s5 = inlined_call_operand.vmem [shape: f32[32,1], index: 5, kind: input, shape index: {}]
  %s6 = inlined_call_operand.<no memory space> [shape: f32[1,1], index: 6, kind: input, shape index: {}]
  %s7 = inlined_call_operand.vmem [shape: f32[1,128], index: 7, kind: output, shape index: {}]
  %s8 = sld [smem:[#allocation0]]
  $region38: #{net_forward.1} parent=0
    _
  %s10 = ssub.s32 1, %s8
  %s11 = scalar_select 0, %s10, %s8
  %12 = sst [smem:[#allocation2]] %s6
  // Predicated region
  $region2: #{net_forward.1} parent=0 // pred_check
    _
  $region3: #{net_forward.1} parent=0 // pred_check_branch
    %14 = sbr.rel (0) target = $region5
  $region4: #{net_forward.1} parent=0 // pred_region
    _
  $region5: #{net_forward.1} parent=0 // pred_fallthru
    _
  // Predicated region
  $region6: #{net_forward.1} parent=0 // pred_check
    _
  $region7: #{net_forward.1} parent=0 // pred_check_branch
    %16 = sbr.rel (0) target = $region9
  $region8: #{net_forward.1} parent=0 // pred_region
    _
  $region9: #{net_forward.1} parent=0 // pred_fallthru
    _
  // Predicated region
  $region10: #{net_forward.1} parent=0 // pred_check
    _
  $region11: #{net_forward.1} parent=0 // pred_check_branch
    %18 = sbr.rel (0) target = $region13
  $region12: #{net_forward.1} parent=0 // pred_region
    _
  $region13: #{net_forward.1} parent=0 // pred_fallthru
    _
  // Predicated region
  $region14: #{net_forward.1} parent=0 // pred_check
    _
  $region15: #{net_forward.1} parent=0 // pred_check_branch
    %20 = sbr.rel (0) target = $region17
  $region16: #{net_forward.1} parent=0 // pred_region
    _
  $region17: #{net_forward.1} parent=0 // pred_fallthru
    _
  // Predicated region
  $region18: #{net_forward.1} parent=0 // pred_check
    _
  $region19: #{net_forward.1} parent=0 // pred_check_branch
    %22 = sbr.rel (0) target = $region21
  $region20: #{net_forward.1} parent=0 // pred_region
    _
  $region21: #{net_forward.1} parent=0 // pred_fallthru
    _
  // Predicated region
  $region22: #{net_forward.1} parent=0 // pred_check
    _
  $region23: #{net_forward.1} parent=0 // pred_check_branch
    %24 = sbr.rel (0) target = $region25
  $region24: #{net_forward.1} parent=0 // pred_region
    _
  $region25: #{net_forward.1} parent=0 // pred_fallthru
    _
  // Predicated region
  $region26: #{net_forward.1} parent=0 // pred_check
    _
  $region27: #{net_forward.1} parent=0 // pred_check_branch
    %26 = sbr.rel (0) target = $region29
  $region28: #{net_forward.1} parent=0 // pred_region
    _
  $region29: #{net_forward.1} parent=0 // pred_fallthru
    _
  %v27 = vld [vmem:[%s0] sm:$0x3]
  %v28 = vld [vmem:[%s1] sm:$0xff]
  %v29 = vld [vmem:[%s1 + $0x8] sm:$0xff]
  %v30 = vld [vmem:[%s1 + $0x10] sm:$0xff]
  %v31 = vld [vmem:[%s1 + $0x18] sm:$0xff]
  %v32 = vld [vmem:[%s2] sm:$0xff]
  %v33 = vld [vmem:[%s2 + $0x8] sm:$0xff]
  %v34 = vld [vmem:[%s2 + $0x10] sm:$0xff]
  %v35 = vld [vmem:[%s2 + $0x18] sm:$0xff]
  %37 = vset.pattern.permute.xlu0 0
  %38 = vperm.xlu0 %37, %v32
  %v39 = vpop.permute.xlu0 %38
  %42 = vset.pattern.permute.xlu0 0
  %43 = vperm.xlu0 %42, %v33
  %v44 = vpop.permute.xlu0 %43
  %47 = vset.pattern.permute.xlu0 0
  %48 = vperm.xlu0 %47, %v34
  %v49 = vpop.permute.xlu0 %48
  %52 = vset.pattern.permute.xlu0 0
  %53 = vperm.xlu0 %52, %v35
  %v54 = vpop.permute.xlu0 %53
  %vm56 = vcmask 15360
  %v58 = vsel %vm56, %v28, 0
  %v61 = vsel %vm56, %v29, 0
  %v64 = vsel %vm56, %v30, 0
  %v67 = vsel %vm56, %v31, 0
  %vm69 = vcmask 1041408
  %v71 = vsel %vm69, %v27, 0
  %73 = vmatprep.subr.mxu0 0.0
  %74 = vmatpush1.msra.mxu0 0.0
  %75 = vmatprep.subr.mxu0 0.0
  %76 = vmatpush1.msra.mxu0 0.0
  %77 = vmatprep.subr.mxu0 0.0
  %78 = vmatpush1.msra.mxu0 0.0
  %79 = vmatprep.subr.mxu0 0.0
  %80 = vmatpush1.msra.mxu0 0.0
  %81 = vmatprep.subr.mxu0 0.0
  %82 = vmatpush1.msra.mxu0 0.0
  %83 = vmatprep.subr.mxu0 0.0
  %84 = vmatpush1.msra.mxu0 0.0
  %85 = vmatprep.subr.mxu0 0.0
  %86 = vmatpush1.msra.mxu0 0.0
  %87 = vmatprep.subr.mxu0 0.0
  %88 = vmatpush1.msra.mxu0 0.0
  %89 = vmatprep.subr.mxu0 0.0
  %90 = vmatpush1.msra.mxu0 0.0
  %91 = vmatprep.subr.mxu0 0.0
  %92 = vmatpush1.msra.mxu0 0.0
  %93 = vmatprep.subr.mxu0 0.0
  %94 = vmatpush1.msra.mxu0 0.0
  %95 = vmatprep.subr.mxu0 0.0
  %96 = vmatpush1.msra.mxu0 0.0
  %97 = vmatprep.subr.mxu0 0.0
  %98 = vmatpush1.msra.mxu0 0.0
  %99 = vmatprep.subr.mxu0 0.0
  %100 = vmatpush1.msra.mxu0 0.0
  %101 = vmatprep.subr.mxu0 0.0
  %102 = vmatpush1.msra.mxu0 0.0
  %103 = vmatprep.subr.mxu0 0.0
  %104 = vmatpush1.msra.mxu0 %v71
  %105 = vmatprep.subr.mxu0 0.0
  %106 = vmatpush2.msra.mxu0 0.0
  %107 = vmatprep.subr.mxu0 0.0
  %108 = vmatpush2.msra.mxu0 0.0
  %109 = vmatprep.subr.mxu0 0.0
  %110 = vmatpush2.msra.mxu0 0.0
  %111 = vmatprep.subr.mxu0 0.0
  %112 = vmatpush2.msra.mxu0 0.0
  %113 = vmatprep.subr.mxu0 0.0
  %114 = vmatpush2.msra.mxu0 0.0
  %115 = vmatprep.subr.mxu0 0.0
  %116 = vmatpush2.msra.mxu0 0.0
  %117 = vmatprep.subr.mxu0 0.0
  %118 = vmatpush2.msra.mxu0 0.0
  %119 = vmatprep.subr.mxu0 0.0
  %120 = vmatpush2.msra.mxu0 0.0
  %121 = vmatprep.subr.mxu0 0.0
  %122 = vmatpush2.msra.mxu0 0.0
  %123 = vmatprep.subr.mxu0 0.0
  %124 = vmatpush2.msra.mxu0 0.0
  %125 = vmatprep.subr.mxu0 0.0
  %126 = vmatpush2.msra.mxu0 0.0
  %127 = vmatprep.subr.mxu0 0.0
  %128 = vmatpush2.msra.mxu0 0.0
  %129 = vmatprep.subr.mxu0 0.0
  %130 = vmatpush2.msra.mxu0 0.0
  %131 = vmatprep.subr.mxu0 0.0
  %132 = vmatpush2.msra.mxu0 0.0
  %133 = vmatprep.subr.mxu0 0.0
  %134 = vmatpush2.msra.mxu0 0.0
  %135 = vmatprep.subr.mxu0 0.0
  %136 = vmatpush2.msra.mxu0 0.0
  %137 = vmatprep.mubr.f32.mxu0 0.0
  %138 = vmatmul.mubr.f32.gmra.mxu0 %v58
  %v139 = vpop.f32.mrf.mxu0
  %v140 = vadd.f32 %v39, %v139
  %v141 = vpop.f32.mrf.mxu0
  %142 = vmatprep.mubr.f32.mxu0 0.0
  %143 = vmatmul.mubr.f32.gmra.mxu0 %v61
  %v144 = vpop.f32.mrf.mxu0
  %v145 = vadd.f32 %v44, %v144
  %v146 = vpop.f32.mrf.mxu0
  %147 = vmatprep.mubr.f32.mxu0 0.0
  %148 = vmatmul.mubr.f32.gmra.mxu0 %v64
  %v149 = vpop.f32.mrf.mxu0
  %v150 = vadd.f32 %v49, %v149
  %v151 = vpop.f32.mrf.mxu0
  %152 = vmatprep.mubr.f32.mxu0 0.0
  %153 = vmatmul.mubr.f32.gmra.mxu0 %v67
  %v154 = vpop.f32.mrf.mxu0
  %v155 = vadd.f32 %v54, %v154
  %v156 = vpop.f32.mrf.mxu0
  %157 = vdwg.mxu0
  %v158 = vtanh.pop %v140
  %v159 = vtanh.pop %v145
  %v160 = vtanh.pop %v150
  %v161 = vtanh.pop %v155
  %v162 = vld [vmem:[%s3] sm:$0xff]
  %v163 = vld [vmem:[%s3 + $0x8] sm:$0xff]
  %v164 = vld [vmem:[%s3 + $0x10] sm:$0xff]
  %v165 = vld [vmem:[%s3 + $0x18] sm:$0xff]
  %v166 = vld [vmem:[%s4] sm:$0xff]
  %v167 = vld [vmem:[%s4 + $0x8] sm:$0xff]
  %v168 = vld [vmem:[%s4 + $0x10] sm:$0xff]
  %v169 = vld [vmem:[%s4 + $0x18] sm:$0xff]
  %171 = vset.pattern.permute.xlu0 0
  %172 = vperm.xlu0 %171, %v166
  %v173 = vpop.permute.xlu0 %172
  %176 = vset.pattern.permute.xlu0 0
  %177 = vperm.xlu0 %176, %v167
  %v178 = vpop.permute.xlu0 %177
  %181 = vset.pattern.permute.xlu0 0
  %182 = vperm.xlu0 %181, %v168
  %v183 = vpop.permute.xlu0 %182
  %186 = vset.pattern.permute.xlu0 0
  %187 = vperm.xlu0 %186, %v169
  %v188 = vpop.permute.xlu0 %187
  %vm190 = vcmask 261120
  %v192 = vsel %vm190, %v162, 0
  %v195 = vsel %vm190, %v163, 0
  %v198 = vsel %vm190, %v164, 0
  %v201 = vsel %vm190, %v165, 0
  %203 = vmatprep.subr.mxu0 0.0
  %204 = vmatpush1.msra.mxu0 0.0
  %205 = vmatprep.subr.mxu0 0.0
  %206 = vmatpush1.msra.mxu0 0.0
  %207 = vmatprep.subr.mxu0 0.0
  %208 = vmatpush1.msra.mxu0 0.0
  %209 = vmatprep.subr.mxu0 0.0
  %210 = vmatpush1.msra.mxu0 0.0
  %211 = vmatprep.subr.mxu0 0.0
  %212 = vmatpush1.msra.mxu0 0.0
  %213 = vmatprep.subr.mxu0 0.0
  %214 = vmatpush1.msra.mxu0 0.0
  %215 = vmatprep.subr.mxu0 0.0
  %216 = vmatpush1.msra.mxu0 0.0
  %217 = vmatprep.subr.mxu0 0.0
  %218 = vmatpush1.msra.mxu0 0.0
  %219 = vmatprep.subr.mxu0 0.0
  %220 = vmatpush1.msra.mxu0 0.0
  %221 = vmatprep.subr.mxu0 0.0
  %222 = vmatpush1.msra.mxu0 0.0
  %223 = vmatprep.subr.mxu0 0.0
  %224 = vmatpush1.msra.mxu0 0.0
  %225 = vmatprep.subr.mxu0 0.0
  %226 = vmatpush1.msra.mxu0 0.0
  %227 = vmatprep.subr.mxu0 0.0
  %228 = vmatpush1.msra.mxu0 %v161
  %229 = vmatprep.subr.mxu0 0.0
  %230 = vmatpush1.msra.mxu0 %v160
  %231 = vmatprep.subr.mxu0 0.0
  %232 = vmatpush1.msra.mxu0 %v159
  %233 = vmatprep.subr.mxu0 0.0
  %234 = vmatpush1.msra.mxu0 %v158
  %235 = vmatprep.subr.mxu0 0.0
  %236 = vmatpush2.msra.mxu0 0.0
  %237 = vmatprep.subr.mxu0 0.0
  %238 = vmatpush2.msra.mxu0 0.0
  %239 = vmatprep.subr.mxu0 0.0
  %240 = vmatpush2.msra.mxu0 0.0
  %241 = vmatprep.subr.mxu0 0.0
  %242 = vmatpush2.msra.mxu0 0.0
  %243 = vmatprep.subr.mxu0 0.0
  %244 = vmatpush2.msra.mxu0 0.0
  %245 = vmatprep.subr.mxu0 0.0
  %246 = vmatpush2.msra.mxu0 0.0
  %247 = vmatprep.subr.mxu0 0.0
  %248 = vmatpush2.msra.mxu0 0.0
  %249 = vmatprep.subr.mxu0 0.0
  %250 = vmatpush2.msra.mxu0 0.0
  %251 = vmatprep.subr.mxu0 0.0
  %252 = vmatpush2.msra.mxu0 0.0
  %253 = vmatprep.subr.mxu0 0.0
  %254 = vmatpush2.msra.mxu0 0.0
  %255 = vmatprep.subr.mxu0 0.0
  %256 = vmatpush2.msra.mxu0 0.0
  %257 = vmatprep.subr.mxu0 0.0
  %258 = vmatpush2.msra.mxu0 0.0
  %259 = vmatprep.subr.mxu0 0.0
  %260 = vmatpush2.msra.mxu0 0.0
  %261 = vmatprep.subr.mxu0 0.0
  %262 = vmatpush2.msra.mxu0 0.0
  %263 = vmatprep.subr.mxu0 0.0
  %264 = vmatpush2.msra.mxu0 0.0
  %265 = vmatprep.subr.mxu0 0.0
  %266 = vmatpush2.msra.mxu0 0.0
  %267 = vmatprep.mubr.f32.mxu0 0.0
  %268 = vmatmul.mubr.f32.gmra.mxu0 %v192
  %v269 = vpop.f32.mrf.mxu0
  %v270 = vadd.f32 %v173, %v269
  %v271 = vpop.f32.mrf.mxu0
  %272 = vmatprep.mubr.f32.mxu0 0.0
  %273 = vmatmul.mubr.f32.gmra.mxu0 %v195
  %v274 = vpop.f32.mrf.mxu0
  %v275 = vadd.f32 %v178, %v274
  %v276 = vpop.f32.mrf.mxu0
  %277 = vmatprep.mubr.f32.mxu0 0.0
  %278 = vmatmul.mubr.f32.gmra.mxu0 %v198
  %v279 = vpop.f32.mrf.mxu0
  %v280 = vadd.f32 %v183, %v279
  %v281 = vpop.f32.mrf.mxu0
  %282 = vmatprep.mubr.f32.mxu0 0.0
  %283 = vmatmul.mubr.f32.gmra.mxu0 %v201
  %v284 = vpop.f32.mrf.mxu0
  %v285 = vadd.f32 %v188, %v284
  %v286 = vpop.f32.mrf.mxu0
  %287 = vdwg.mxu0
  %v288 = vtanh.pop %v270
  %v289 = vtanh.pop %v275
  %v290 = vtanh.pop %v280
  %v291 = vtanh.pop %v285
  %v292 = vld [vmem:[%s5] sm:$0xff]
  %v293 = vld [vmem:[%s5 + $0x8] sm:$0xff]
  %v294 = vld [vmem:[%s5 + $0x10] sm:$0xff]
  %v295 = vld [vmem:[%s5 + $0x18] sm:$0xff]
  %297 = vset.pattern.permute.xlu0 0
  %298 = vperm.xlu0 %297, %v292
  %v299 = vpop.permute.xlu0 %298
  %302 = vset.pattern.permute.xlu0 0
  %303 = vperm.xlu0 %302, %v293
  %v304 = vpop.permute.xlu0 %303
  %307 = vset.pattern.permute.xlu0 0
  %308 = vperm.xlu0 %307, %v294
  %v309 = vpop.permute.xlu0 %308
  %312 = vset.pattern.permute.xlu0 0
  %313 = vperm.xlu0 %312, %v295
  %v314 = vpop.permute.xlu0 %313
  %v316 = vmul.f32 %v299, %v288
  %v317 = vmul.f32 %v304, %v289
  %v318 = vmul.f32 %v309, %v290
  %v319 = vmul.f32 %v314, %v291
  %v320 = vadd.f32 %v316, %v317
  %v321 = vadd.f32 %v320, %v318
  %v322 = vadd.f32 %v321, %v319
  %v323 = vrot.slane %v322, 4
  %v324 = vadd.f32 %v322, %v323
  %v325 = vrot.slane %v324, 2
  %v326 = vadd.f32 %v324, %v325
  %v327 = vrot.slane %v326, 1
  %v328 = vadd.f32 %v326, %v327
  %s329 = sld [smem:[#allocation2]]
  %v330 = vstv %s329
  %v331 = vadd.f32 %v328, %v330
  %332 = vst [vmem:[%s7] sm:$0x1] %v331
  // Predicated region
  $region30: #{net_forward.1} parent=0 // pred_check
    _
  $region31: #{net_forward.1} parent=0 // pred_check_branch
    %334 = sbr.rel (0) target = $region33
  $region32: #{net_forward.1} parent=0 // pred_region
    _
  $region33: #{net_forward.1} parent=0 // pred_fallthru
    _
  // Predicated region
  $region34: #{net_forward.1} parent=0 // pred_check
    _
  $region35: #{net_forward.1} parent=0 // pred_check_branch
    %336 = sbr.rel (0) target = $region37
  $region36: #{net_forward.1} parent=0 // pred_region
    _
  $region37: #{net_forward.1} parent=0 // pred_fallthru
    _

</llo_original>
